<compile_context>
chip_gen: v5e
topology: v5e:2x2
jax: 0.10.0
libtpu: 0.0.40
codegen_flags: <defaults>
</compile_context>

<pallas_src>
import jax
import jax.numpy as jnp
from jax.experimental import pallas as pl
from jax.experimental.pallas import tpu as pltpu

D_MODEL = 128
D_HID = D_MODEL // 16          # SEBlock(128, reduction=16) -> hidden 8
LN_EPS = 1e-5
LANE = 128


def _dfr_kernel(x_ref, pw_ref, pb_ref, g_ref, beta_ref,
                w1_ref, b1_ref, w2_ref, b2_ref, o_ref):
    bt, seq, c_x = x_ref.shape

    # ---- projection: one flattened (bt*seq, c_x) matmul, f32 accumulate ----
    x2d = x_ref[...].reshape(bt * seq, c_x)
    h = jnp.dot(x2d, pw_ref[...],
                preferred_element_type=jnp.float32) + pb_ref[...]   # (bt*seq, 128) f32

    # ---- LayerNorm over features (two-pass variance for robustness) ----
    mu = jnp.mean(h, axis=-1, keepdims=True)
    d = h - mu
    var = jnp.mean(d * d, axis=-1, keepdims=True)
    hn = d * jax.lax.rsqrt(var + LN_EPS)
    hn = hn * g_ref[...] + beta_ref[...]                            # (bt*seq, 128)
    hn3 = hn.reshape(bt, seq, D_MODEL)                              # (bt, seq, 128)

    # ---- SE block: seq-mean -> fc1 -> ReLU -> fc2 -> sigmoid (tiny MXU dots) ----
    y = jnp.mean(hn3, axis=1)                                       # (bt, 128)
    y1 = jnp.dot(y, w1_ref[...], preferred_element_type=jnp.float32) + b1_ref[...]
    y1 = jnp.maximum(y1, 0.0)                                       # (bt, 8)
    y2 = jnp.dot(y1, w2_ref[...], preferred_element_type=jnp.float32) + b2_ref[...]
    y2 = jax.nn.sigmoid(y2)                                         # (bt, 128)

    # ---- per-channel scale, broadcast over the sequence; bf16 writeback ----
    o_ref[...] = (hn3 * y2[:, None, :]).astype(o_ref.dtype)


def _pick_batch_tile(B, S, x_row_bytes, vmem_budget, n_tc):
    """Largest batch tile whose resident VMEM (DMA blocks + f32 temps) fits budget."""
    # Per batch element:
    #   input block  (double buffered)          : 2 * S * x_row_bytes
    #   output block (double buffered, bf16)    : 2 * S * 128 * 2
    #   f32 intermediates (h, hn, scaled result): ~3 * S * 128 * 4
    per_b = S * (2 * x_row_bytes + 2 * D_MODEL * 2 + 3 * D_MODEL * 4)
    cap = max(1, vmem_budget // per_b)
    bt = min(B, cap)
    # Only v7x has 2 TensorCores: keep >=2 "parallel" grid steps there, and only
    # when each step still has >=512 flattened rows (MXU-occupancy floor).
    # On v5e/v6e the grid is a serial loop -> always take the largest tile.
    if n_tc >= 2 and bt == B and B >= 2:
        half = (B + 1) // 2
        if half * S >= 512:
            bt = half
    return bt


def dynamic_feature_reducer(x, params):
    B, S, C_in = x.shape
    pw, pb, g, beta, w1, b1, w2, b2 = params

    # ---- input dtype/padding policy: only pad+cast when it reduces bytes ----
    c_pad = ((C_in + LANE - 1) // LANE) * LANE
    if c_pad * 2 < C_in * 4:
        # Lane-dense bf16 projection inputs (bytes/row strictly reduced).
        if c_pad == C_in:
            x_in = x.astype(jnp.bfloat16)
            pw_in = pw.astype(jnp.bfloat16)
        else:
            x_in = jnp.zeros((B, S, c_pad), jnp.bfloat16).at[:, :, :C_in].set(
                x.astype(jnp.bfloat16))
            pw_in = jnp.zeros((c_pad, D_MODEL), jnp.bfloat16).at[:C_in, :].set(
                pw.astype(jnp.bfloat16))
        c_x, x_row_bytes, w_elt = c_pad, c_pad * 2, 2
    else:
        # e.g. C_in=32: padding to 128 bf16 would DOUBLE input bytes and add an
        # extra XLA pad pass -> ship raw f32 with the true C_in as the last dim.
        x_in, pw_in = x, pw
        c_x, x_row_bytes, w_elt = C_in, C_in * 4, 4

    # ---- chip-generation aware VMEM limit / tensorcore count ----
    try:
        kind = jax.devices()[0].device_kind.lower()
    except Exception:
        kind = ""
    is_v7 = "v7" in kind
    n_tc = 2 if is_v7 else 1
    try:
        phys = pltpu.get_tpu_info().vmem_capacity_bytes
    except Exception:
        phys = (64 if is_v7 else 128) * 1024 * 1024
    # Hard cap: v7x per-core VMEM is 64 MiB even if the API reports per-chip.
    vmem_limit = min(phys * 3 // 4, (48 if is_v7 else 96) * 1024 * 1024)

    pw_bytes = c_x * D_MODEL * w_elt
    budget = max(vmem_limit - 4 * pw_bytes - (2 << 20), vmem_limit // 4)
    bt = _pick_batch_tile(B, S, x_row_bytes, budget, n_tc)
    grid = (pl.cdiv(B, bt),)   # partial last block allowed; rows are independent
    # TODO(synk): for very long sequences on v7x (one batch element won't fit the
    # budget) add an inner S tile that accumulates the SE seq-sum in scratch and
    # applies the sigmoid scale in a second pass.

    const = lambda shape: pl.BlockSpec(shape, lambda b: (0, 0))
    if pw_bytes > (1 << 20):
        # Constant index map -> single-buffer MiB-scale projection weights.
        pw_spec = pl.BlockSpec((c_x, D_MODEL), lambda b: (0, 0),
                               pipeline_mode=pl.Buffered(1))
    else:
        pw_spec = pl.BlockSpec((c_x, D_MODEL), lambda b: (0, 0))

    return pl.pallas_call(
        _dfr_kernel,
        out_shape=jax.ShapeDtypeStruct((B, S, D_MODEL), jnp.bfloat16),
        grid_spec=pltpu.PrefetchScalarGridSpec(
            num_scalar_prefetch=0,
            grid=grid,
            in_specs=[
                pl.BlockSpec((bt, S, c_x), lambda b: (b, 0, 0)),   # x
                pw_spec,                                           # proj weight
                const((1, D_MODEL)),                               # proj bias
                const((1, D_MODEL)),                               # LN gamma
                const((1, D_MODEL)),                               # LN beta
                const((D_MODEL, D_HID)),                           # SE fc1 weight
                const((1, D_HID)),                                 # SE fc1 bias
                const((D_HID, D_MODEL)),                           # SE fc2 weight
                const((1, D_MODEL)),                               # SE fc2 bias
            ],
            out_specs=pl.BlockSpec((bt, S, D_MODEL), lambda b: (b, 0, 0)),
        ),
        compiler_params=pltpu.CompilerParams(
            dimension_semantics=("parallel",),
            vmem_limit_bytes=vmem_limit),
    )(x_in, pw_in, pb, g, beta, w1, b1, w2, b2)


def _reference(x, params):
    """Pure-f32 golden reference matching the PyTorch module."""
    pw, pb, g, beta, w1, b1, w2, b2 = params
    h = x @ pw + pb
    mu = h.mean(-1, keepdims=True)
    var = ((h - mu) ** 2).mean(-1, keepdims=True)
    hn = (h - mu) / jnp.sqrt(var + LN_EPS) * g + beta
    y = hn.mean(axis=1)                              # (B, 128)
    y = jnp.maximum(y @ w1 + b1, 0.0)
    y = jax.nn.sigmoid(y @ w2 + b2)
    return hn * y[:, None, :]


if __name__ == "__main__":
    B, S, C_in = 2, 8, 32

    key = jax.random.PRNGKey(0)
    keys = jax.random.split(key, 9)
    # Deterministic synthetic parameters ((in, out) layout, i.e. W^T of PyTorch).
    pw = jax.random.normal(keys[0], (C_in, D_MODEL), jnp.float32) * 0.1
    pb = jax.random.normal(keys[1], (1, D_MODEL), jnp.float32) * 0.1
    g = 1.0 + 0.05 * jax.random.normal(keys[2], (1, D_MODEL), jnp.float32)
    beta = 0.05 * jax.random.normal(keys[3], (1, D_MODEL), jnp.float32)
    w1 = jax.random.normal(keys[4], (D_MODEL, D_HID), jnp.float32) * 0.1
    b1 = jax.random.normal(keys[5], (1, D_HID), jnp.float32) * 0.1
    w2 = jax.random.normal(keys[6], (D_HID, D_MODEL), jnp.float32) * 0.1
    b2 = jax.random.normal(keys[7], (1, D_MODEL), jnp.float32) * 0.1
    params = (pw, pb, g, beta, w1, b1, w2, b2)

    x = jax.random.normal(keys[8], (B, S, C_in), jnp.float32)

    out = jax.block_until_ready(dynamic_feature_reducer(x, params))
    ref = _reference(x, params)

    assert out.shape == (B, S, D_MODEL)
    assert out.dtype == jnp.bfloat16
    # Tolerance covers the bf16 output cast (compute is f32 for this C_in path).
    assert jnp.allclose(out.astype(jnp.float32), ref, atol=2e-2, rtol=2e-2)
    print("KERNEL_OK")
</pallas_src>

<mosaic_0001>
module attributes {stable_mosaic.version = 11 : i64} {
  func.func @_dfr_kernel(%arg0: i32, %arg1: memref<2x8x32xf32, #tpu.memory_space<vmem>>, %arg2: memref<32x128xf32, #tpu.memory_space<vmem>>, %arg3: memref<1x128xf32, #tpu.memory_space<vmem>>, %arg4: memref<1x128xf32, #tpu.memory_space<vmem>>, %arg5: memref<1x128xf32, #tpu.memory_space<vmem>>, %arg6: memref<128x8xf32, #tpu.memory_space<vmem>>, %arg7: memref<1x8xf32, #tpu.memory_space<vmem>>, %arg8: memref<8x128xf32, #tpu.memory_space<vmem>>, %arg9: memref<1x128xf32, #tpu.memory_space<vmem>>, %arg10: memref<2x8x128xbf16, #tpu.memory_space<vmem>>) attributes {dimension_semantics = [#tpu.dimension_semantics<parallel>], iteration_bounds = array<i64: 1>, scalar_prefetch = 0 : i64, scratch_operands = 0 : i64, tpu.core_type = #tpu.core_type<tc>, window_params = [{transform_indices = @transform_0, window_bounds = array<i64: 2, 8, 32>}, {pipeline_mode = #tpu.pipeline_mode<synchronous>, transform_indices = @transform_1, window_bounds = array<i64: 32, 128>}, {pipeline_mode = #tpu.pipeline_mode<synchronous>, transform_indices = @transform_2, window_bounds = array<i64: 1, 128>}, {pipeline_mode = #tpu.pipeline_mode<synchronous>, transform_indices = @transform_3, window_bounds = array<i64: 1, 128>}, {pipeline_mode = #tpu.pipeline_mode<synchronous>, transform_indices = @transform_4, window_bounds = array<i64: 1, 128>}, {pipeline_mode = #tpu.pipeline_mode<synchronous>, transform_indices = @transform_5, window_bounds = array<i64: 128, 8>}, {pipeline_mode = #tpu.pipeline_mode<synchronous>, transform_indices = @transform_6, window_bounds = array<i64: 1, 8>}, {pipeline_mode = #tpu.pipeline_mode<synchronous>, transform_indices = @transform_7, window_bounds = array<i64: 8, 128>}, {pipeline_mode = #tpu.pipeline_mode<synchronous>, transform_indices = @transform_8, window_bounds = array<i64: 1, 128>}, {transform_indices = @transform_9, window_bounds = array<i64: 2, 8, 128>}]} {
    %c0 = arith.constant 0 : index
    %c0_0 = arith.constant 0 : index
    %c0_1 = arith.constant 0 : index
    %0 = vector.load %arg1[%c0, %c0_0, %c0_1] : memref<2x8x32xf32, #tpu.memory_space<vmem>>, vector<2x8x32xf32>
    %1 = vector.shape_cast %0 : vector<2x8x32xf32> to vector<16x32xf32>
    %c0_2 = arith.constant 0 : index
    %c0_3 = arith.constant 0 : index
    %2 = vector.load %arg2[%c0_2, %c0_3] : memref<32x128xf32, #tpu.memory_space<vmem>>, vector<32x128xf32>
    %cst = arith.constant dense<0.000000e+00> : vector<16x128xf32>
    %3 = tpu.matmul %1, %2, %cst {dimension_numbers = #tpu.dot_dimension_numbers<[1], [0], [0], [1], [0, 0, 1, 1], [], []>} : vector<16x32xf32>, vector<32x128xf32>, vector<16x128xf32> -> vector<16x128xf32>
    %c0_4 = arith.constant 0 : index
    %c0_5 = arith.constant 0 : index
    %4 = vector.load %arg3[%c0_4, %c0_5] : memref<1x128xf32, #tpu.memory_space<vmem>>, vector<1x128xf32>
    %5 = vector.broadcast %4 : vector<1x128xf32> to vector<16x128xf32>
    %6 = arith.addf %3, %5 : vector<16x128xf32>
    %cst_6 = arith.constant dense<0.000000e+00> : vector<16xf32>
    %7 = vector.multi_reduction <add>, %6, %cst_6 [1] : vector<16x128xf32> to vector<16xf32>
    %8 = vector.shape_cast %7 : vector<16xf32> to vector<16x1xf32>
    %cst_7 = arith.constant 1.280000e+02 : f32
    %9 = vector.broadcast %cst_7 : f32 to vector<16x1xf32>
    %10 = arith.divf %8, %9 : vector<16x1xf32>
    %11 = vector.broadcast %10 : vector<16x1xf32> to vector<16x128xf32>
    %12 = arith.subf %6, %11 : vector<16x128xf32>
    %13 = arith.mulf %12, %12 : vector<16x128xf32>
    %cst_8 = arith.constant dense<0.000000e+00> : vector<16xf32>
    %14 = vector.multi_reduction <add>, %13, %cst_8 [1] : vector<16x128xf32> to vector<16xf32>
    %15 = vector.shape_cast %14 : vector<16xf32> to vector<16x1xf32>
    %cst_9 = arith.constant 1.280000e+02 : f32
    %16 = vector.broadcast %cst_9 : f32 to vector<16x1xf32>
    %17 = arith.divf %15, %16 : vector<16x1xf32>
    %cst_10 = arith.constant 9.99999974E-6 : f32
    %18 = vector.broadcast %cst_10 : f32 to vector<16x1xf32>
    %19 = arith.addf %17, %18 : vector<16x1xf32>
    %20 = math.rsqrt %19 : vector<16x1xf32>
    %21 = vector.broadcast %20 : vector<16x1xf32> to vector<16x128xf32>
    %22 = arith.mulf %12, %21 : vector<16x128xf32>
    %c0_11 = arith.constant 0 : index
    %c0_12 = arith.constant 0 : index
    %23 = vector.load %arg4[%c0_11, %c0_12] : memref<1x128xf32, #tpu.memory_space<vmem>>, vector<1x128xf32>
    %24 = vector.broadcast %23 : vector<1x128xf32> to vector<16x128xf32>
    %25 = arith.mulf %22, %24 : vector<16x128xf32>
    %c0_13 = arith.constant 0 : index
    %c0_14 = arith.constant 0 : index
    %26 = vector.load %arg5[%c0_13, %c0_14] : memref<1x128xf32, #tpu.memory_space<vmem>>, vector<1x128xf32>
    %27 = vector.broadcast %26 : vector<1x128xf32> to vector<16x128xf32>
    %28 = arith.addf %25, %27 : vector<16x128xf32>
    %29 = vector.shape_cast %28 : vector<16x128xf32> to vector<2x8x128xf32>
    %cst_15 = arith.constant dense<0.000000e+00> : vector<2x128xf32>
    %30 = vector.multi_reduction <add>, %29, %cst_15 [1] : vector<2x8x128xf32> to vector<2x128xf32>
    %cst_16 = arith.constant 8.000000e+00 : f32
    %31 = vector.broadcast %cst_16 : f32 to vector<2x128xf32>
    %32 = arith.divf %30, %31 : vector<2x128xf32>
    %c0_17 = arith.constant 0 : index
    %c0_18 = arith.constant 0 : index
    %33 = vector.load %arg6[%c0_17, %c0_18] : memref<128x8xf32, #tpu.memory_space<vmem>>, vector<128x8xf32>
    %cst_19 = arith.constant dense<0.000000e+00> : vector<2x8xf32>
    %34 = tpu.matmul %32, %33, %cst_19 {dimension_numbers = #tpu.dot_dimension_numbers<[1], [0], [0], [1], [0, 0, 1, 1], [], []>} : vector<2x128xf32>, vector<128x8xf32>, vector<2x8xf32> -> vector<2x8xf32>
    %c0_20 = arith.constant 0 : index
    %c0_21 = arith.constant 0 : index
    %35 = vector.load %arg7[%c0_20, %c0_21] : memref<1x8xf32, #tpu.memory_space<vmem>>, vector<1x8xf32>
    %36 = vector.broadcast %35 : vector<1x8xf32> to vector<2x8xf32>
    %37 = arith.addf %34, %36 : vector<2x8xf32>
    %cst_22 = arith.constant 0.000000e+00 : f32
    %38 = vector.broadcast %cst_22 : f32 to vector<2x8xf32>
    %39 = arith.maximumf %37, %38 : vector<2x8xf32>
    %c0_23 = arith.constant 0 : index
    %c0_24 = arith.constant 0 : index
    %40 = vector.load %arg8[%c0_23, %c0_24] : memref<8x128xf32, #tpu.memory_space<vmem>>, vector<8x128xf32>
    %cst_25 = arith.constant dense<0.000000e+00> : vector<2x128xf32>
    %41 = tpu.matmul %39, %40, %cst_25 {dimension_numbers = #tpu.dot_dimension_numbers<[1], [0], [0], [1], [0, 0, 1, 1], [], []>} : vector<2x8xf32>, vector<8x128xf32>, vector<2x128xf32> -> vector<2x128xf32>
    %c0_26 = arith.constant 0 : index
    %c0_27 = arith.constant 0 : index
    %42 = vector.load %arg9[%c0_26, %c0_27] : memref<1x128xf32, #tpu.memory_space<vmem>>, vector<1x128xf32>
    %43 = vector.broadcast %42 : vector<1x128xf32> to vector<2x128xf32>
    %44 = arith.addf %41, %43 : vector<2x128xf32>
    %45 = arith.negf %44 : vector<2x128xf32>
    %46 = math.exp %45 : vector<2x128xf32>
    %cst_28 = arith.constant 1.000000e+00 : f32
    %47 = vector.broadcast %cst_28 : f32 to vector<2x128xf32>
    %48 = arith.addf %47, %46 : vector<2x128xf32>
    %49 = arith.divf %47, %48 : vector<2x128xf32>
    %50 = vector.shape_cast %49 : vector<2x128xf32> to vector<2x1x128xf32>
    %51 = vector.broadcast %50 : vector<2x1x128xf32> to vector<2x8x128xf32>
    %52 = arith.mulf %29, %51 : vector<2x8x128xf32>
    %53 = arith.truncf %52 : vector<2x8x128xf32> to vector<2x8x128xbf16>
    %c0_29 = arith.constant 0 : index
    %c0_30 = arith.constant 0 : index
    %c0_31 = arith.constant 0 : index
    %54 = vector.load %arg10[%c0_29, %c0_30, %c0_31] : memref<2x8x128xbf16, #tpu.memory_space<vmem>>, vector<2x8x128xbf16>
    tpu.vector_store %arg10[%c0_29, %c0_30, %c0_31], %53 {strides = array<i32>} : memref<2x8x128xbf16, #tpu.memory_space<vmem>>, vector<2x8x128xbf16>,
    return
  }
  func.func @transform_0(%arg0: i32) -> (i32, i32, i32) {
    %c0_i32 = arith.constant 0 : i32
    %c0_i32_0 = arith.constant 0 : i32
    %c0_i32_1 = arith.constant 0 : i32
    return %arg0, %c0_i32, %c0_i32_0 : i32, i32, i32
  }
  func.func @transform_1(%arg0: i32) -> (i32, i32) {
    %c0_i32 = arith.constant 0 : i32
    %c0_i32_0 = arith.constant 0 : i32
    %c0_i32_1 = arith.constant 0 : i32
    return %c0_i32, %c0_i32_0 : i32, i32
  }
  func.func @transform_2(%arg0: i32) -> (i32, i32) {
    %c0_i32 = arith.constant 0 : i32
    %c0_i32_0 = arith.constant 0 : i32
    %c0_i32_1 = arith.constant 0 : i32
    return %c0_i32, %c0_i32_0 : i32, i32
  }
  func.func @transform_3(%arg0: i32) -> (i32, i32) {
    %c0_i32 = arith.constant 0 : i32
    %c0_i32_0 = arith.constant 0 : i32
    %c0_i32_1 = arith.constant 0 : i32
    return %c0_i32, %c0_i32_0 : i32, i32
  }
  func.func @transform_4(%arg0: i32) -> (i32, i32) {
    %c0_i32 = arith.constant 0 : i32
    %c0_i32_0 = arith.constant 0 : i32
    %c0_i32_1 = arith.constant 0 : i32
    return %c0_i32, %c0_i32_0 : i32, i32
  }
  func.func @transform_5(%arg0: i32) -> (i32, i32) {
    %c0_i32 = arith.constant 0 : i32
    %c0_i32_0 = arith.constant 0 : i32
    %c0_i32_1 = arith.constant 0 : i32
    return %c0_i32, %c0_i32_0 : i32, i32
  }
  func.func @transform_6(%arg0: i32) -> (i32, i32) {
    %c0_i32 = arith.constant 0 : i32
    %c0_i32_0 = arith.constant 0 : i32
    %c0_i32_1 = arith.constant 0 : i32
    return %c0_i32, %c0_i32_0 : i32, i32
  }
  func.func @transform_7(%arg0: i32) -> (i32, i32) {
    %c0_i32 = arith.constant 0 : i32
    %c0_i32_0 = arith.constant 0 : i32
    %c0_i32_1 = arith.constant 0 : i32
    return %c0_i32, %c0_i32_0 : i32, i32
  }
  func.func @transform_8(%arg0: i32) -> (i32, i32) {
    %c0_i32 = arith.constant 0 : i32
    %c0_i32_0 = arith.constant 0 : i32
    %c0_i32_1 = arith.constant 0 : i32
    return %c0_i32, %c0_i32_0 : i32, i32
  }
  func.func @transform_9(%arg0: i32) -> (i32, i32, i32) {
    %c0_i32 = arith.constant 0 : i32
    %c0_i32_0 = arith.constant 0 : i32
    %c0_i32_1 = arith.constant 0 : i32
    return %arg0, %c0_i32, %c0_i32_0 : i32, i32, i32
  }
}

</mosaic_0001>

<llo_original>
// kernel: tpu_custom_call.1
$region0: #{tpu_custom_call.1}
  #allocation0 [shape = 'u32[]', space=smem, size = 0x4, offset = 0x4, fixed_abs, tag = 'smem constant byte address 0x4 - core index']
  #allocation1 [shape = 'u32[72,128]{1,0:T(1,128)}', space=vmem, size = 0x9000, scoped, tag = 'internal scratch']
  %s0 = inlined_call_operand.vmem [shape: f32[2,8,32], index: 0, kind: input, shape index: {}]
  %s1 = inlined_call_operand.vmem [shape: f32[32,128], index: 1, kind: input, shape index: {}]
  %s2 = inlined_call_operand.vmem [shape: f32[1,128], index: 2, kind: input, shape index: {}]
  %s3 = inlined_call_operand.vmem [shape: f32[1,128], index: 3, kind: input, shape index: {}]
  %s4 = inlined_call_operand.vmem [shape: f32[1,128], index: 4, kind: input, shape index: {}]
  %s5 = inlined_call_operand.vmem [shape: f32[128,8], index: 5, kind: input, shape index: {}]
  %s6 = inlined_call_operand.vmem [shape: f32[1,8], index: 6, kind: input, shape index: {}]
  %s7 = inlined_call_operand.vmem [shape: f32[8,128], index: 7, kind: input, shape index: {}]
  %s8 = inlined_call_operand.vmem [shape: f32[1,128], index: 8, kind: input, shape index: {}]
  %s9 = inlined_call_operand.hbm [shape: bf16[2,8,128], index: 9, kind: output, shape index: {}]
  %s10 = sld [smem:[#allocation0]]
  $region46: #{tpu_custom_call.1} parent=0
    _
  %s12 = ssub.s32 1, %s10
  %s13 = scalar_select 0, %s12, %s10
  $region1: #{tpu_custom_call.1} parent=0
    #allocation2 [shape = 'u8[4096]{0}', space=vmem, size = 0x1000, scoped, tag = 'output window, operand 0, single buffered']
    #allocation3 [shape = 's32[1]{0}', space=sflag, size = 0x4, scoped, tag = 'scoped memory for tpu_custom_call.1']
    %14 = vsyncpa [#allocation3], 0
    // Predicated region
    $region2: #{tpu_custom_call.1} parent=1 // pred_check
      _
    $region3: #{tpu_custom_call.1} parent=1 // pred_check_branch
      %16 = sbr.rel (0) target = $region5
    $region4: #{tpu_custom_call.1} parent=1 // pred_region
      _
    $region5: #{tpu_custom_call.1} parent=1 // pred_fallthru
      _
    // Predicated region
    $region6: #{tpu_custom_call.1} parent=1 // pred_check
      _
    $region7: #{tpu_custom_call.1} parent=1 // pred_check_branch
      %18 = sbr.rel (0) target = $region9
    $region8: #{tpu_custom_call.1} parent=1 // pred_region
      _
    $region9: #{tpu_custom_call.1} parent=1 // pred_fallthru
      _
    // Predicated region
    $region10: #{tpu_custom_call.1} parent=1 // pred_check
      _
    $region11: #{tpu_custom_call.1} parent=1 // pred_check_branch
      %20 = sbr.rel (0) target = $region13
    $region12: #{tpu_custom_call.1} parent=1 // pred_region
      _
    $region13: #{tpu_custom_call.1} parent=1 // pred_fallthru
      _
    // Predicated region
    $region14: #{tpu_custom_call.1} parent=1 // pred_check
      _
    $region15: #{tpu_custom_call.1} parent=1 // pred_check_branch
      %22 = sbr.rel (0) target = $region17
    $region16: #{tpu_custom_call.1} parent=1 // pred_region
      _
    $region17: #{tpu_custom_call.1} parent=1 // pred_fallthru
      _
    // Predicated region
    $region18: #{tpu_custom_call.1} parent=1 // pred_check
      _
    $region19: #{tpu_custom_call.1} parent=1 // pred_check_branch
      %24 = sbr.rel (0) target = $region21
    $region20: #{tpu_custom_call.1} parent=1 // pred_region
      _
    $region21: #{tpu_custom_call.1} parent=1 // pred_fallthru
      _
    // Predicated region
    $region22: #{tpu_custom_call.1} parent=1 // pred_check
      _
    $region23: #{tpu_custom_call.1} parent=1 // pred_check_branch
      %26 = sbr.rel (0) target = $region25
    $region24: #{tpu_custom_call.1} parent=1 // pred_region
      _
    $region25: #{tpu_custom_call.1} parent=1 // pred_fallthru
      _
    // Predicated region
    $region26: #{tpu_custom_call.1} parent=1 // pred_check
      _
    $region27: #{tpu_custom_call.1} parent=1 // pred_check_branch
      %28 = sbr.rel (0) target = $region29
    $region28: #{tpu_custom_call.1} parent=1 // pred_region
      _
    $region29: #{tpu_custom_call.1} parent=1 // pred_fallthru
      _
    // Predicated region
    $region30: #{tpu_custom_call.1} parent=1 // pred_check
      _
    $region31: #{tpu_custom_call.1} parent=1 // pred_check_branch
      %30 = sbr.rel (0) target = $region33
    $region32: #{tpu_custom_call.1} parent=1 // pred_region
      _
    $region33: #{tpu_custom_call.1} parent=1 // pred_fallthru
      _
    // Predicated region
    $region34: #{tpu_custom_call.1} parent=1 // pred_check
      _
    $region35: #{tpu_custom_call.1} parent=1 // pred_check_branch
      %32 = sbr.rel (0) target = $region37
    $region36: #{tpu_custom_call.1} parent=1 // pred_region
      _
    $region37: #{tpu_custom_call.1} parent=1 // pred_fallthru
      _
    %v33 = vld [vmem:[%s0] sm:$0xff]
    %v34 = vld [vmem:[%s0 + $0x8] sm:$0xff]
    %v35 = vld [vmem:[%s1] sm:$0xff]
    %v36 = vld [vmem:[%s1 + $0x8] sm:$0xff]
    %v37 = vld [vmem:[%s1 + $0x10] sm:$0xff]
    %v38 = vld [vmem:[%s1 + $0x18] sm:$0xff]
    %v39 = vld [vmem:[%s2] sm:$0x1]
    %v41 = vperm.slane %v39, 0
    %vm43 = vcmask 261120
    %v45 = vsel %vm43, %v33, 0
    %v48 = vsel %vm43, %v34, 0
    %50 = vmatpush.msra.mxu0 0.0
    %51 = vmatpush.msra.mxu0 0.0
    %52 = vmatpush.msra.mxu0 0.0
    %53 = vmatpush.msra.mxu0 0.0
    %54 = vmatpush.msra.mxu0 0.0
    %55 = vmatpush.msra.mxu0 0.0
    %56 = vmatpush.msra.mxu0 0.0
    %57 = vmatpush.msra.mxu0 0.0
    %58 = vmatpush.msra.mxu0 0.0
    %59 = vmatpush.msra.mxu0 0.0
    %60 = vmatpush.msra.mxu0 0.0
    %61 = vmatpush.msra.mxu0 0.0
    %62 = vmatpush.msra.mxu0 %v38
    %63 = vmatpush.msra.mxu0 %v37
    %64 = vmatpush.msra.mxu0 %v36
    %65 = vmatpush.msra.mxu0 %v35
    %66 = vmatmul.f32.gmra.mxu0 %v45
    %v67 = vpop.f32.mrf.mxu0
    %v68 = vadd.f32 %v41, %v67
    %69 = vmatmul.f32.gmra.mxu0 %v48
    %v70 = vpop.f32.mrf.mxu0
    %v71 = vadd.f32 %v41, %v70
    %72 = vdwg.mxu0
    %73 = vadd.xlane.f32.xlu0 %v68
    %v74 = vpop.xlane.xlu0 %73
    %75 = vadd.xlane.f32.xlu0 %v71
    %v76 = vpop.xlane.xlu0 %75
    %v77 = vrcp.pop 128.0
    %v78 = vmul.f32 128.0, %v77
    %v79 = vsub.f32 1.0, %v78
    %v80 = vmul.f32 %v77, %v79
    %v81 = vadd.f32 %v77, %v80
    %vm82 = vweird.f32 %v77
    %v83 = vsel %vm82, %v77, %v81
    %v84 = vmul.f32 %v74, %v83
    %v85 = vmul.f32 %v76, %v83
    %v86 = vsub.f32 %v68, %v84
    %v87 = vsub.f32 %v71, %v85
    %v88 = vmul.f32 %v86, %v86
    %v89 = vmul.f32 %v87, %v87
    %90 = vadd.xlane.f32.xlu0 %v88
    %v91 = vpop.xlane.xlu0 %90
    %92 = vadd.xlane.f32.xlu0 %v89
    %v93 = vpop.xlane.xlu0 %92
    %v94 = vmul.f32 %v91, %v83
    %v95 = vmul.f32 %v93, %v83
    %v96 = vadd.f32 %v94, 1e-05
    %v97 = vadd.f32 %v95, 1e-05
    %v98 = vrsqrt.pop %v96
    %v99 = vmul.f32 %v98, %v96
    %v100 = vmul.f32 %v99, %v98
    %v101 = vmul.f32 0.5, %v100
    %v102 = vsub.f32 1.5, %v101
    %v103 = vmul.f32 %v98, %v102
    %vm104 = vweird.f32 %v96
    %vm105 = vweird.f32 %v98
    %vm106 = vmor %vm104, %vm105
    %v107 = vsel %vm106, %v98, %v103
    %v108 = vrsqrt.pop %v97
    %v109 = vmul.f32 %v108, %v97
    %v110 = vmul.f32 %v109, %v108
    %v111 = vmul.f32 0.5, %v110
    %v112 = vsub.f32 1.5, %v111
    %v113 = vmul.f32 %v108, %v112
    %vm114 = vweird.f32 %v97
    %vm115 = vweird.f32 %v108
    %vm116 = vmor %vm114, %vm115
    %v117 = vsel %vm116, %v108, %v113
    %v118 = vmul.f32 %v86, %v107
    %v119 = vmul.f32 %v87, %v117
    %v120 = vld [vmem:[%s3] sm:$0x1]
    %v122 = vperm.slane %v120, 0
    %v124 = vmul.f32 %v118, %v122
    %v125 = vmul.f32 %v119, %v122
    %v126 = vld [vmem:[%s4] sm:$0x1]
    %v128 = vperm.slane %v126, 0
    %v130 = vadd.f32 %v124, %v128
    %v131 = vadd.f32 %v125, %v128
    %v132 = vrot.slane %v130, 4
    %v133 = vadd.f32 %v130, %v132
    %v134 = vrot.slane %v133, 2
    %v135 = vadd.f32 %v133, %v134
    %v136 = vrot.slane %v135, 1
    %v137 = vadd.f32 %v135, %v136
    %v138 = vrot.slane %v131, 4
    %v139 = vadd.f32 %v131, %v138
    %v140 = vrot.slane %v139, 2
    %v141 = vadd.f32 %v139, %v140
    %v142 = vrot.slane %v141, 1
    %v143 = vadd.f32 %v141, %v142
    %v144 = vrcp.pop 8.0
    %v145 = vmul.f32 8.0, %v144
    %v146 = vsub.f32 1.0, %v145
    %v147 = vmul.f32 %v144, %v146
    %v148 = vadd.f32 %v144, %v147
    %vm149 = vweird.f32 %v144
    %v150 = vsel %vm149, %v144, %v148
    %v151 = vmul.f32 %v137, %v150
    %v152 = vmul.f32 %v143, %v150
    %v153 = vld [vmem:[%s5] sm:$0xff]
    %v154 = vld [vmem:[%s5 + $0x8] sm:$0xff]
    %v155 = vld [vmem:[%s5 + $0x10] sm:$0xff]
    %v156 = vld [vmem:[%s5 + $0x18] sm:$0xff]
    %v157 = vld [vmem:[%s5 + $0x20] sm:$0xff]
    %v158 = vld [vmem:[%s5 + $0x28] sm:$0xff]
    %v159 = vld [vmem:[%s5 + $0x30] sm:$0xff]
    %v160 = vld [vmem:[%s5 + $0x38] sm:$0xff]
    %v161 = vld [vmem:[%s5 + $0x40] sm:$0xff]
    %v162 = vld [vmem:[%s5 + $0x48] sm:$0xff]
    %v163 = vld [vmem:[%s5 + $0x50] sm:$0xff]
    %v164 = vld [vmem:[%s5 + $0x58] sm:$0xff]
    %v165 = vld [vmem:[%s5 + $0x60] sm:$0xff]
    %v166 = vld [vmem:[%s5 + $0x68] sm:$0xff]
    %v167 = vld [vmem:[%s5 + $0x70] sm:$0xff]
    %v168 = vld [vmem:[%s5 + $0x78] sm:$0xff]
    %v169 = vld [vmem:[%s6] sm:$0x1]
    %v171 = vperm.slane %v169, 0
    %vm175 = vcmask 1041409
    %v176 = vsel %vm175, %v152, %v151
    %178 = vmatpush.msra.mxu0 %v168
    %179 = vmatpush.msra.mxu0 %v167
    %180 = vmatpush.msra.mxu0 %v166
    %181 = vmatpush.msra.mxu0 %v165
    %182 = vmatpush.msra.mxu0 %v164
    %183 = vmatpush.msra.mxu0 %v163
    %184 = vmatpush.msra.mxu0 %v162
    %185 = vmatpush.msra.mxu0 %v161
    %186 = vmatpush.msra.mxu0 %v160
    %187 = vmatpush.msra.mxu0 %v159
    %188 = vmatpush.msra.mxu0 %v158
    %189 = vmatpush.msra.mxu0 %v157
    %190 = vmatpush.msra.mxu0 %v156
    %191 = vmatpush.msra.mxu0 %v155
    %192 = vmatpush.msra.mxu0 %v154
    %193 = vmatpush.msra.mxu0 %v153
    %194 = vmatmul.f32.gmra.mxu0 %v176
    %v195 = vpop.f32.mrf.mxu0
    %v196 = vadd.f32 %v171, %v195
    %197 = vdwg.mxu0
    %v198 = vmax.f32 %v196, 0.0
    %v199 = vld [vmem:[%s7] sm:$0xff]
    %v200 = vld [vmem:[%s8] sm:$0x1]
    %v202 = vperm.slane %v200, 0
    %vm204 = vcmask 64512
    %v206 = vsel %vm204, %v198, 0
    %208 = vmatpush.msra.mxu0 0.0
    %209 = vmatpush.msra.mxu0 0.0
    %210 = vmatpush.msra.mxu0 0.0
    %211 = vmatpush.msra.mxu0 0.0
    %212 = vmatpush.msra.mxu0 0.0
    %213 = vmatpush.msra.mxu0 0.0
    %214 = vmatpush.msra.mxu0 0.0
    %215 = vmatpush.msra.mxu0 0.0
    %216 = vmatpush.msra.mxu0 0.0
    %217 = vmatpush.msra.mxu0 0.0
    %218 = vmatpush.msra.mxu0 0.0
    %219 = vmatpush.msra.mxu0 0.0
    %220 = vmatpush.msra.mxu0 0.0
    %221 = vmatpush.msra.mxu0 0.0
    %222 = vmatpush.msra.mxu0 0.0
    %223 = vmatpush.msra.mxu0 %v199
    %224 = vmatmul.f32.gmra.mxu0 %v206
    %v225 = vpop.f32.mrf.mxu0
    %v226 = vadd.f32 %v202, %v225
    %227 = vdwg.mxu0
    %v228 = vxor.u32 %v226, 2147483648
    %v229 = vmul.f32 %v228, 1.442695
    %v230 = vpow.pop %v229
    %v231 = vadd.f32 %v230, 1.0
    %v232 = vrcp.pop %v231
    %v233 = vmul.f32 %v231, %v232
    %v234 = vsub.f32 1.0, %v233
    %v235 = vmul.f32 %v232, %v234
    %v236 = vadd.f32 %v232, %v235
    %vm237 = vweird.f32 %v231
    %vm238 = vweird.f32 %v232
    %vm239 = vmor %vm237, %vm238
    %v240 = vsel %vm239, %v232, %v236
    %v241 = vand.u32 2147483647, %v231
    %vm242 = vcmp.eq.f32.partialorder %v241, 8.507059e+37
    %v243 = vand.u32 %v231, 2147483648
    %v244 = vor.u32 1.1754944e-38, %v243
    %v245 = vsel %vm242, %v244, %v240
    %v246 = vmul.f32 1.0, %v245
    %v248 = vrot.slane %v246, 1
    %v249 = vperm.slane %v246, 0
    %v250 = vperm.slane %v248, 0
    %v253 = vmul.f32 %v130, %v249
    %v254 = vmul.f32 %v131, %v250
    %v255 = vpack.c.bf16 %v253, %v253
    %v256 = vpack.c.bf16 %v254, %v254
    %257 = vst [vmem:[#allocation2] sm:$0xf] %v255
    %258 = vst [vmem:[#allocation2 + $0x4] sm:$0xf] %v256
    // Predicated region
    $region38: #{tpu_custom_call.1} parent=1 // pred_check
      _
    $region39: #{tpu_custom_call.1} parent=1 // pred_check_branch
      %260 = sbr.rel (0) target = $region41
    $region40: #{tpu_custom_call.1} parent=1 // pred_region
      %262 = vsyncadd [#allocation3], 0
      %s263 = sshll.u32 [#allocation2], 4
      %s264 = int_to_ptr.vmem [resolvable:$true] %s263
      %s265 = sshll.u32 %s9, 4
      %s266 = int_to_ptr.hbm [resolvable:$true] %s265
      %271 = dma.vmem_to_hbm [thread:$0]  %s264, 128, %s266, [#allocation3], 64, 64, 4
    $region41: #{tpu_custom_call.1} parent=1 // pred_fallthru
      _
    // Predicated region
    $region42: #{tpu_custom_call.1} parent=1 // pred_check
      _
    $region43: #{tpu_custom_call.1} parent=1 // pred_check_branch
      %273 = sbr.rel (0) target = $region45
    $region44: #{tpu_custom_call.1} parent=1 // pred_region
      %275 = dma.done [#allocation3], 128
    $region45: #{tpu_custom_call.1} parent=1 // pred_fallthru
      _
    %276 = vsyncpa [#allocation3], 1

</llo_original>
